<compile_context>
chip_gen: v7x
topology: tpu7x:2x2x1
jax: 0.10.0
libtpu: 0.0.40
codegen_flags: <defaults>
</compile_context>

<pallas_src>
import jax
import jax.numpy as jnp
from jax.experimental import pallas as pl
from jax.experimental.pallas import tpu as pltpu


# ----------------------------------------------------------------------------
# Generic row-tiled matmul + bias kernel (used for every conv-as-matmul stage)
# ----------------------------------------------------------------------------
def _matmul_bias_kernel(x_ref, w_ref, b_ref, o_ref):
    o_ref[...] = (jnp.dot(x_ref[...], w_ref[...],
                          preferred_element_type=jnp.float32)
                  + b_ref[...]).astype(o_ref.dtype)


def _round_up(x, m):
    return ((x + m - 1) // m) * m


def matmul_bias(x2d, w, b, tb=256):
    """y = x2d @ w + b, rows tiled over the grid, weights resident."""
    x2d = x2d.astype(jnp.float32)
    w = w.astype(jnp.float32)
    n, cin = x2d.shape
    cout = w.shape[1]
    tb = min(tb, _round_up(n, 8))
    n_pad = _round_up(n, tb)
    if n_pad != n:
        x2d = jnp.pad(x2d, ((0, n_pad - n), (0, 0)))
    b2 = b.reshape(1, cout).astype(jnp.float32)

    flops = 2 * n_pad * cin * cout
    bytes_accessed = 4 * (n_pad * cin + cin * cout + n_pad * cout + cout)

    out = pl.pallas_call(
        _matmul_bias_kernel,
        out_shape=jax.ShapeDtypeStruct((n_pad, cout), jnp.float32),
        grid_spec=pltpu.PrefetchScalarGridSpec(
            num_scalar_prefetch=0,
            grid=(n_pad // tb,),
            in_specs=[
                pl.BlockSpec((tb, cin), lambda i: (i, 0)),     # activations
                pl.BlockSpec((cin, cout), lambda i: (0, 0)),   # weight (resident)
                pl.BlockSpec((1, cout), lambda i: (0, 0)),     # bias   (resident)
            ],
            out_specs=pl.BlockSpec((tb, cout), lambda i: (i, 0)),
        ),
        compiler_params=pltpu.CompilerParams(
            dimension_semantics=("parallel",)),
        cost_estimate=pl.CostEstimate(flops=flops, transcendentals=0,
                                      bytes_accessed=bytes_accessed),
    )(x2d, w, b2)
    return out[:n]


# ----------------------------------------------------------------------------
# Fused channel-attention core (per batch element, all heads batched)
# q,k,v : (heads, d, S)  -> out (heads, d, S)
# ----------------------------------------------------------------------------
def _channel_attn_kernel(q_ref, k_ref, v_ref, t_ref, o_ref):
    q = q_ref[...]
    k = k_ref[...]
    v = v_ref[...]
    qn = q / jnp.maximum(jnp.sqrt(jnp.sum(q * q, axis=-1, keepdims=True)), 1e-12)
    kn = k / jnp.maximum(jnp.sqrt(jnp.sum(k * k, axis=-1, keepdims=True)), 1e-12)
    attn = jnp.einsum('hde,hfe->hdf', qn, kn,
                      preferred_element_type=jnp.float32) * t_ref[...]
    m = jnp.max(attn, axis=-1, keepdims=True)
    e = jnp.exp(attn - m)
    p = e / jnp.sum(e, axis=-1, keepdims=True)
    o = jnp.einsum('hdf,hfs->hds', p, v, preferred_element_type=jnp.float32)
    o_ref[...] = o.astype(o_ref.dtype)


def channel_attention_core(q, k, v, t):
    B, Hh, dh, S = q.shape
    qf = q.reshape(B * Hh, dh, S).astype(jnp.float32)
    kf = k.reshape(B * Hh, dh, S).astype(jnp.float32)
    vf = v.reshape(B * Hh, dh, S).astype(jnp.float32)
    out = pl.pallas_call(
        _channel_attn_kernel,
        out_shape=jax.ShapeDtypeStruct((B * Hh, dh, S), jnp.float32),
        grid_spec=pltpu.PrefetchScalarGridSpec(
            num_scalar_prefetch=0,
            grid=(B,),
            in_specs=[
                pl.BlockSpec((Hh, dh, S), lambda b: (b, 0, 0)),
                pl.BlockSpec((Hh, dh, S), lambda b: (b, 0, 0)),
                pl.BlockSpec((Hh, dh, S), lambda b: (b, 0, 0)),
                pl.BlockSpec((Hh, 1, 1), lambda b: (0, 0, 0)),
            ],
            out_specs=pl.BlockSpec((Hh, dh, S), lambda b: (b, 0, 0)),
        ),
        compiler_params=pltpu.CompilerParams(
            dimension_semantics=("parallel",)),
    )(qf, kf, vf, t.astype(jnp.float32))
    return out.reshape(B, Hh, dh, S)


# ----------------------------------------------------------------------------
# Fused spatial-attention core (per batch element, all heads batched)
# qt,kt : (heads, S, d)  v : (heads, d, S)  -> out (heads, S, d)
# ----------------------------------------------------------------------------
def _spatial_attn_kernel(qt_ref, kt_ref, v_ref, t_ref, o_ref):
    qt = qt_ref[...]
    kt = kt_ref[...]
    v = v_ref[...]
    qn = qt / jnp.maximum(jnp.sqrt(jnp.sum(qt * qt, axis=-1, keepdims=True)), 1e-12)
    kn = kt / jnp.maximum(jnp.sqrt(jnp.sum(kt * kt, axis=-1, keepdims=True)), 1e-12)
    attn = jnp.einsum('hsd,htd->hst', qn, kn,
                      preferred_element_type=jnp.float32) * t_ref[...]
    m = jnp.max(attn, axis=-1, keepdims=True)
    e = jnp.exp(attn - m)
    p = e / jnp.sum(e, axis=-1, keepdims=True)
    o = jnp.einsum('hst,hdt->hsd', p, v, preferred_element_type=jnp.float32)
    o_ref[...] = o.astype(o_ref.dtype)


def spatial_attention_core(qt, kt, v, t):
    B, Hh, S, dh = qt.shape
    qf = qt.reshape(B * Hh, S, dh).astype(jnp.float32)
    kf = kt.reshape(B * Hh, S, dh).astype(jnp.float32)
    vf = v.reshape(B * Hh, dh, S).astype(jnp.float32)
    out = pl.pallas_call(
        _spatial_attn_kernel,
        out_shape=jax.ShapeDtypeStruct((B * Hh, S, dh), jnp.float32),
        grid_spec=pltpu.PrefetchScalarGridSpec(
            num_scalar_prefetch=0,
            grid=(B,),
            in_specs=[
                pl.BlockSpec((Hh, S, dh), lambda b: (b, 0, 0)),
                pl.BlockSpec((Hh, S, dh), lambda b: (b, 0, 0)),
                pl.BlockSpec((Hh, dh, S), lambda b: (b, 0, 0)),
                pl.BlockSpec((Hh, 1, 1), lambda b: (0, 0, 0)),
            ],
            out_specs=pl.BlockSpec((Hh, S, dh), lambda b: (b, 0, 0)),
        ),
        compiler_params=pltpu.CompilerParams(
            dimension_semantics=("parallel",)),
    )(qf, kf, vf, t.astype(jnp.float32))
    return out.reshape(B, Hh, S, dh)


# ----------------------------------------------------------------------------
# Parameter prep: densify grouped 1x1 convs into block-diagonal weight matrices
# ----------------------------------------------------------------------------
def _block_diag(blocks):
    # blocks: (G, a, b) -> (G*a, G*b) block-diagonal
    G, a, b = blocks.shape
    eye = jnp.eye(G, dtype=blocks.dtype)
    return jnp.einsum('gij,gh->gihj', blocks, eye).reshape(G * a, G * b)


def prep_dense_params(p, cfg):
    s = cfg['shuffle']
    sc = cfg['sque_ch']
    ssp = cfg['sque_sp']
    eg = ssp // sc
    E = cfg['expan']
    dense = {}
    # ch_sp_squeeze conv1: (sc, D, 1, 1) -> (D, sc)
    dense['W1'] = p['w1'][:, :, 0, 0].T
    dense['b1'] = p['b1']
    # ch_sp_squeeze conv2 (grouped, kernel=stride=s) after space-to-depth
    w2 = p['w2'][:, 0].reshape(sc, eg, s * s)              # [g, o, ky*s+kx]
    dense['W2'] = _block_diag(jnp.transpose(w2, (0, 2, 1)))  # (sc*s*s, ssp)
    dense['b2'] = p['b2']
    # attention grouped qkv / fus convs
    for name in ('ca', 'sa'):
        ap = p[name]
        wq = ap['w_qkv'][:, 0, 0, 0].reshape(ssp, 3 * E)   # [c, j]
        dense[name + '_Wqkv'] = _block_diag(wq[:, None, :])  # (ssp, ssp*3E)
        dense[name + '_bqkv'] = ap['b_qkv']
        wf = ap['w_fus'][:, :, 0, 0]                       # [c, e]
        dense[name + '_Wfus'] = _block_diag(wf[:, :, None])  # (ssp*E, ssp)
        dense[name + '_bfus'] = ap['b_fus']
    # sp_ch_unsqueeze conv1 (grouped 1x1)
    w3 = p['w3'][:, :, 0, 0].reshape(sc, s * s, eg)        # [g, o, i]
    dense['W3'] = _block_diag(jnp.transpose(w3, (0, 2, 1)))  # (ssp, sc*s*s)
    dense['b3'] = p['b3']
    # sp_ch_unsqueeze conv2: (D, sc, 1, 1) -> (sc, D)
    dense['W4'] = p['w4'][:, :, 0, 0].T
    dense['b4'] = p['b4']
    return dense


# ----------------------------------------------------------------------------
# Layout helpers (pure reshape/transpose, no compute)
# ----------------------------------------------------------------------------
def _split_qkv(rows_qkv, B, S, C, E, heads, dh):
    x = rows_qkv.reshape(B, S, C, 3 * E).transpose(0, 3, 2, 1)   # (B, 3E, C, S)
    q = x[:, :E].reshape(B, heads, dh, S)
    k = x[:, E:2 * E].reshape(B, heads, dh, S)
    v = x[:, 2 * E:].reshape(B, heads, dh, S)
    return q, k, v


def _attn_out_rows(o, B, S, C, E):
    # o: (B, heads, d, S) -> rows (B*S, C*E) with feature index c*E + e
    x = o.reshape(B, E, C, S).transpose(0, 3, 2, 1)              # (B, S, C, E)
    return x.reshape(B * S, C * E)


# ----------------------------------------------------------------------------
# Full forward (Pallas path)
# ----------------------------------------------------------------------------
def condensed_attention_forward(x, params, dense, cfg):
    B, D, H, W = x.shape
    s = cfg['shuffle']
    sc = cfg['sque_ch']
    ssp = cfg['sque_sp']
    E = cfg['expan']
    heads = sc * E
    dh = ssp // sc
    Hq, Wq = H // s, W // s
    S = Hq * Wq

    # --- ch_sp_squeeze ---
    rows = x.transpose(0, 2, 3, 1).reshape(B * H * W, D)
    rows = matmul_bias(rows, dense['W1'], dense['b1'])            # (B*H*W, sc)
    r = rows.reshape(B, Hq, s, Wq, s, sc).transpose(0, 1, 3, 5, 2, 4)
    rows = r.reshape(B * S, sc * s * s)                           # space-to-depth
    rows = matmul_bias(rows, dense['W2'], dense['b2'])            # (B*S, ssp)

    # channel permutation idx
    rows = jnp.take(rows, cfg['idx'], axis=-1)

    # --- channel attention ---
    rows_qkv = matmul_bias(rows, dense['ca_Wqkv'], dense['ca_bqkv'])
    q, k, v = _split_qkv(rows_qkv, B, S, ssp, E, heads, dh)
    o = channel_attention_core(q, k, v, params['ca']['t'].reshape(heads, 1, 1))
    rows = _attn_out_rows(o, B, S, ssp, E)
    rows = matmul_bias(rows, dense['ca_Wfus'], dense['ca_bfus'])  # (B*S, ssp)

    # channel permutation nidx
    rows = jnp.take(rows, cfg['nidx'], axis=-1)

    # --- spatial attention ---
    rows_qkv = matmul_bias(rows, dense['sa_Wqkv'], dense['sa_bqkv'])
    q, k, v = _split_qkv(rows_qkv, B, S, ssp, E, heads, dh)
    qt = jnp.swapaxes(q, -1, -2)
    kt = jnp.swapaxes(k, -1, -2)
    o = spatial_attention_core(qt, kt, v, params['sa']['t'].reshape(heads, 1, 1))
    o = jnp.swapaxes(o, -1, -2)                                   # (B, heads, d, S)
    rows = _attn_out_rows(o, B, S, ssp, E)
    rows = matmul_bias(rows, dense['sa_Wfus'], dense['sa_bfus'])  # (B*S, ssp)

    # --- sp_ch_unsqueeze ---
    rows = matmul_bias(rows, dense['W3'], dense['b3'])            # (B*S, sc*s*s)
    r = rows.reshape(B, Hq, Wq, sc, s, s).transpose(0, 1, 4, 2, 5, 3)
    rows = r.reshape(B * H * W, sc)                               # pixel shuffle
    rows = matmul_bias(rows, dense['W4'], dense['b4'])            # (B*H*W, D)
    return rows.reshape(B, H, W, D).transpose(0, 3, 1, 2)


# ----------------------------------------------------------------------------
# Pure-JAX reference (mirrors the PyTorch module with lax grouped convs)
# ----------------------------------------------------------------------------
def conv2d_ref(x, w, b, stride=1, groups=1):
    y = jax.lax.conv_general_dilated(
        x, w, window_strides=(stride, stride), padding='VALID',
        dimension_numbers=('NCHW', 'OIHW', 'NCHW'),
        feature_group_count=groups)
    return y + b[None, :, None, None]


def channel_attention_ref(x, ap, num_chans, expan):
    B, C, H, W = x.shape
    heads = num_chans * expan
    qkv = conv2d_ref(x, ap['w_qkv'], ap['b_qkv'], groups=C)
    qkv = qkv.reshape(B, C, expan * 3, H, W).transpose(0, 2, 1, 3, 4)
    q, k, v = jnp.split(qkv, 3, axis=1)
    dh = (expan * C) // heads
    q = q.reshape(B, heads, dh, H * W)
    k = k.reshape(B, heads, dh, H * W)
    v = v.reshape(B, heads, dh, H * W)
    q = q / jnp.maximum(jnp.linalg.norm(q, axis=-1, keepdims=True), 1e-12)
    k = k / jnp.maximum(jnp.linalg.norm(k, axis=-1, keepdims=True), 1e-12)
    attn = (q @ jnp.swapaxes(k, -1, -2)) * ap['t']
    attn = jax.nn.softmax(attn, axis=-1)
    x_ = attn @ v
    x_ = x_.reshape(B, expan, C, H, W).transpose(0, 2, 1, 3, 4)
    x_ = x_.reshape(B, C * expan, H, W)
    return conv2d_ref(x_, ap['w_fus'], ap['b_fus'], groups=C)


def spatial_attention_ref(x, ap, num_chans, expan):
    B, C, H, W = x.shape
    heads = num_chans * expan
    qkv = conv2d_ref(x, ap['w_qkv'], ap['b_qkv'], groups=C)
    qkv = qkv.reshape(B, C, expan * 3, H, W).transpose(0, 2, 1, 3, 4)
    q, k, v = jnp.split(qkv, 3, axis=1)
    dh = (expan * C) // heads
    q = q.reshape(B, heads, dh, H * W)
    k = k.reshape(B, heads, dh, H * W)
    v = v.reshape(B, heads, dh, H * W)
    q = q / jnp.maximum(jnp.linalg.norm(q, axis=-2, keepdims=True), 1e-12)
    k = k / jnp.maximum(jnp.linalg.norm(k, axis=-2, keepdims=True), 1e-12)
    attn = (jnp.swapaxes(q, -1, -2) @ k) * ap['t']
    attn = jax.nn.softmax(attn, axis=-1)
    x_ = attn @ jnp.swapaxes(v, -1, -2)          # (B, heads, HW, d)
    x_ = jnp.swapaxes(x_, -1, -2)                # (B, heads, d, HW)
    x_ = x_.reshape(B, expan, C, H, W).transpose(0, 2, 1, 3, 4)
    x_ = x_.reshape(B, C * expan, H, W)
    return conv2d_ref(x_, ap['w_fus'], ap['b_fus'], groups=C)


def pixel_shuffle_ref(x, r):
    B, C, H, W = x.shape
    x = x.reshape(B, C // (r * r), r, r, H, W).transpose(0, 1, 4, 2, 5, 3)
    return x.reshape(B, C // (r * r), H * r, W * r)


def condensed_attention_ref(x, p, cfg):
    s = cfg['shuffle']
    sc = cfg['sque_ch']
    E = cfg['expan']
    x = conv2d_ref(x, p['w1'], p['b1'])
    x = conv2d_ref(x, p['w2'], p['b2'], stride=s, groups=sc)
    x = x[:, cfg['idx']]
    x = channel_attention_ref(x, p['ca'], sc, E)
    x = x[:, cfg['nidx']]
    x = spatial_attention_ref(x, p['sa'], sc, E)
    x = conv2d_ref(x, p['w3'], p['b3'], groups=sc)
    x = pixel_shuffle_ref(x, s)
    x = conv2d_ref(x, p['w4'], p['b4'])
    return x


# ----------------------------------------------------------------------------
# Config / params
# ----------------------------------------------------------------------------
def make_cfg(embed_dim=16, squeezes=(4, 4), shuffle=4, expan=4):
    sc = embed_dim // squeezes[0]
    shuf_sp = sc * shuffle * shuffle
    ssp = shuf_sp // squeezes[1]
    eg = ssp // sc
    idx = [i + j * sc for i in range(sc) for j in range(eg)]
    nidx = [i + j * eg for i in range(eg) for j in range(sc)]
    return dict(embed_dim=embed_dim, shuffle=shuffle, sque_ch=sc, sque_sp=ssp,
                shuf_sp=shuf_sp, each_group=eg, expan=expan,
                idx=jnp.array(idx, jnp.int32), nidx=jnp.array(nidx, jnp.int32))


def init_params(key, cfg):
    D = cfg['embed_dim']
    s = cfg['shuffle']
    sc = cfg['sque_ch']
    ssp = cfg['sque_sp']
    eg = cfg['each_group']
    E = cfg['expan']
    heads = sc * E
    shuf_sp = cfg['shuf_sp']
    ks = jax.random.split(key, 18)

    def w(k, shape, scale):
        return scale * jax.random.normal(k, shape, jnp.float32)

    def attn_params(k0, k1, k2, k3, k4):
        return {
            't': jax.random.uniform(k0, (1, heads, 1, 1), jnp.float32, 0.5, 1.5),
            'w_qkv': w(k1, (ssp * E * 3, 1, 1, 1), 1.0),
            'b_qkv': w(k2, (ssp * E * 3,), 0.1),
            'w_fus': w(k3, (ssp, E, 1, 1), 0.5),
            'b_fus': w(k4, (ssp,), 0.1),
        }

    return {
        'w1': w(ks[0], (sc, D, 1, 1), 0.25), 'b1': w(ks[1], (sc,), 0.1),
        'w2': w(ks[2], (ssp, 1, s, s), 0.25), 'b2': w(ks[3], (ssp,), 0.1),
        'ca': attn_params(ks[4], ks[5], ks[6], ks[7], ks[8]),
        'sa': attn_params(ks[9], ks[10], ks[11], ks[12], ks[13]),
        'w3': w(ks[14], (shuf_sp, eg, 1, 1), 0.5), 'b3': w(ks[15], (shuf_sp,), 0.1),
        'w4': w(ks[16], (D, sc, 1, 1), 0.5), 'b4': w(ks[17], (D,), 0.1),
    }


if __name__ == "__main__":
    cfg = make_cfg(embed_dim=16, squeezes=(4, 4), shuffle=4, expan=4)
    B, H, W = 2, 16, 16

    key = jax.random.PRNGKey(0)
    kx, kp = jax.random.split(key)
    x = jax.random.normal(kx, (B, cfg['embed_dim'], H, W), jnp.float32)
    params = init_params(kp, cfg)
    dense = prep_dense_params(params, cfg)

    out = condensed_attention_forward(x, params, dense, cfg)
    out = jax.block_until_ready(out)
    assert out.shape == (B, cfg['embed_dim'], H, W)

    with jax.default_matmul_precision('highest'):
        ref = condensed_attention_ref(x, params, cfg)
    ref = jax.block_until_ready(ref)

    err = float(jnp.max(jnp.abs(out - ref)))
    scale = float(jnp.max(jnp.abs(ref))) + 1e-6
    assert err / scale < 1e-3, f"relative error {err / scale} (abs {err})"

    print("KERNEL_OK")
</pallas_src>

<mosaic_0001>
module attributes {stable_mosaic.version = 11 : i64} {
  func.func @_matmul_bias_kernel(%arg0: i32, %arg1: memref<256x16xf32, #tpu.memory_space<vmem>>, %arg2: memref<16x4xf32, #tpu.memory_space<vmem>>, %arg3: memref<1x4xf32, #tpu.memory_space<vmem>>, %arg4: memref<256x4xf32, #tpu.memory_space<vmem>>) attributes {dimension_semantics = [#tpu.dimension_semantics<parallel>], iteration_bounds = array<i64: 2>, scalar_prefetch = 0 : i64, scratch_operands = 0 : i64, tpu.core_type = #tpu.core_type<tc>, window_params = [{transform_indices = @transform_0, window_bounds = array<i64: 256, 16>}, {pipeline_mode = #tpu.pipeline_mode<synchronous>, transform_indices = @transform_1, window_bounds = array<i64: 16, 4>}, {pipeline_mode = #tpu.pipeline_mode<synchronous>, transform_indices = @transform_2, window_bounds = array<i64: 1, 4>}, {transform_indices = @transform_3, window_bounds = array<i64: 256, 4>}]} {
    %c0 = arith.constant 0 : index
    %c0_0 = arith.constant 0 : index
    %0 = vector.load %arg1[%c0, %c0_0] : memref<256x16xf32, #tpu.memory_space<vmem>>, vector<256x16xf32>
    %c0_1 = arith.constant 0 : index
    %c0_2 = arith.constant 0 : index
    %1 = vector.load %arg2[%c0_1, %c0_2] : memref<16x4xf32, #tpu.memory_space<vmem>>, vector<16x4xf32>
    %cst = arith.constant dense<0.000000e+00> : vector<256x4xf32>
    %2 = tpu.matmul %0, %1, %cst {dimension_numbers = #tpu.dot_dimension_numbers<[1], [0], [0], [1], [0, 0, 1, 1], [], []>} : vector<256x16xf32>, vector<16x4xf32>, vector<256x4xf32> -> vector<256x4xf32>
    %c0_3 = arith.constant 0 : index
    %c0_4 = arith.constant 0 : index
    %3 = vector.load %arg3[%c0_3, %c0_4] : memref<1x4xf32, #tpu.memory_space<vmem>>, vector<1x4xf32>
    %4 = vector.broadcast %3 : vector<1x4xf32> to vector<256x4xf32>
    %5 = arith.addf %2, %4 : vector<256x4xf32>
    %c0_5 = arith.constant 0 : index
    %c0_6 = arith.constant 0 : index
    %6 = vector.load %arg4[%c0_5, %c0_6] : memref<256x4xf32, #tpu.memory_space<vmem>>, vector<256x4xf32>
    tpu.vector_store %arg4[%c0_5, %c0_6], %5 {strides = array<i32>} : memref<256x4xf32, #tpu.memory_space<vmem>>, vector<256x4xf32>,
    return
  }
  func.func @transform_0(%arg0: i32) -> (i32, i32) {
    %c0_i32 = arith.constant 0 : i32
    %c0_i32_0 = arith.constant 0 : i32
    return %arg0, %c0_i32 : i32, i32
  }
  func.func @transform_1(%arg0: i32) -> (i32, i32) {
    %c0_i32 = arith.constant 0 : i32
    %c0_i32_0 = arith.constant 0 : i32
    %c0_i32_1 = arith.constant 0 : i32
    return %c0_i32, %c0_i32_0 : i32, i32
  }
  func.func @transform_2(%arg0: i32) -> (i32, i32) {
    %c0_i32 = arith.constant 0 : i32
    %c0_i32_0 = arith.constant 0 : i32
    %c0_i32_1 = arith.constant 0 : i32
    return %c0_i32, %c0_i32_0 : i32, i32
  }
  func.func @transform_3(%arg0: i32) -> (i32, i32) {
    %c0_i32 = arith.constant 0 : i32
    %c0_i32_0 = arith.constant 0 : i32
    return %arg0, %c0_i32 : i32, i32
  }
}

</mosaic_0001>

<llo_original>
// kernel: tpu_custom_call.1
$region0: #{tpu_custom_call.1}
  #allocation0 [shape = 'u32[]', space=smem, size = 0x4, offset = 0x4, fixed_abs, tag = 'smem constant byte address 0x4 - core index']
  #allocation1 [shape = 'u32[144,128]{1,0:T(1,128)}', space=vmem, size = 0x12000, scoped, tag = 'internal scratch']
  %s0 = inlined_call_operand.vmem [shape: f32[512,16], index: 0, kind: input, shape index: {}]
  %s1 = inlined_call_operand.vmem [shape: f32[16,4], index: 1, kind: input, shape index: {}]
  %s2 = inlined_call_operand.vmem [shape: f32[1,4], index: 2, kind: input, shape index: {}]
  %s3 = inlined_call_operand.vmem [shape: f32[512,4], index: 3, kind: output, shape index: {}]
  %s4 = sld [smem:[#allocation0]]
  $region45: #{tpu_custom_call.1} parent=0
    _
  %s6 = ssub.s32 1, %s4
  %s7 = scalar_select 0, %s6, %s4
  loop: start=0, step=1, limit=4
  $region2: #{tpu_custom_call.1} parent=0 // loop_pre_header
    _
  $region3: #{tpu_custom_call.1} parent=0 // loop_header
    %s9 = sphi 0, %s13
    %p10 = scmp.ge.s32.totalorder %s9, 4
    %s19 = sphi 0, %s21
    %s22 = sphi 0, %s19
    %s23 = sphi 0, %s22
    %s39 = sphi 0, %s23
    %s43 = sphi 0, %s43
    %s45 = sphi 0, %s43
    %s46 = sphi 0, %s45
    %s60 = sphi 0, %s46
    %s64 = sphi 0, %s64
    %s66 = sphi 0, %s64
    %s67 = sphi 0, %s66
    %s81 = sphi 0, %s67
    %s87 = sphi 0, %s89
    %s90 = sphi 0, %s87
    %s91 = sphi 0, %s90
    %s107 = sphi 0, %s91
  $region4: #{tpu_custom_call.1} parent=0 // loop_header_branch
    %12 = sbr.rel (%p10) target = $region8
  $region5: #{tpu_custom_call.1} parent=0 // loop_body
    %s14 = ssub.s32 %s9, 1
    %s15 = ssub.s32 %s9, 2
    %s16 = sadd.s32 %s9, 1
    %s17 = ssub.s32 %s9, %s16
    %p18 = scmp.eq.s32.totalorder %s17, 0
    %s20 = sadd.s32 %s19, 1
    %s21 = scalar_select %p18, %s19, %s20
    %p24 = pneg %p18
    %p25 = scmp.eq.s32.totalorder %s9, 1
    %p26 = por %p24, %p25
    %p27 = scmp.ne.s32.totalorder %s19, %s22
    %p28 = scmp.eq.s32.totalorder %s9, 0
    %p29 = por %p27, %p28
    %p30 = scmp.ne.s32.totalorder %s19, %s22
    %p31 = scmp.eq.s32.totalorder %s14, 1
    %p32 = por %p30, %p31
    %p33 = scmp.ne.s32.totalorder %s22, %s23
    %p34 = scmp.eq.s32.totalorder %s14, 0
    %p35 = por %p33, %p34
    %p36 = scmp.ne.s32.totalorder %s22, %s23
    %p37 = scmp.eq.s32.totalorder %s15, 1
    %p38 = por %p36, %p37
    %p40 = scmp.ne.s32.totalorder %s23, %s39
    %p41 = scmp.eq.s32.totalorder %s15, 0
    %p42 = por %p40, %p41
    %s44 = sadd.s32 %s43, 1
    %p47 = scmp.eq.s32.totalorder %s9, 1
    %p48 = scmp.ne.s32.totalorder %s43, %s45
    %p49 = scmp.eq.s32.totalorder %s9, 0
    %p50 = por %p48, %p49
    %p51 = scmp.ne.s32.totalorder %s43, %s45
    %p52 = scmp.eq.s32.totalorder %s14, 1
    %p53 = por %p51, %p52
    %p54 = scmp.ne.s32.totalorder %s45, %s46
    %p55 = scmp.eq.s32.totalorder %s14, 0
    %p56 = por %p54, %p55
    %p57 = scmp.ne.s32.totalorder %s45, %s46
    %p58 = scmp.eq.s32.totalorder %s15, 1
    %p59 = por %p57, %p58
    %p61 = scmp.ne.s32.totalorder %s46, %s60
    %p62 = scmp.eq.s32.totalorder %s15, 0
    %p63 = por %p61, %p62
    %s65 = sadd.s32 %s64, 1
    %p68 = scmp.eq.s32.totalorder %s9, 1
    %p69 = scmp.ne.s32.totalorder %s64, %s66
    %p70 = scmp.eq.s32.totalorder %s9, 0
    %p71 = por %p69, %p70
    %p72 = scmp.ne.s32.totalorder %s64, %s66
    %p73 = scmp.eq.s32.totalorder %s14, 1
    %p74 = por %p72, %p73
    %p75 = scmp.ne.s32.totalorder %s66, %s67
    %p76 = scmp.eq.s32.totalorder %s14, 0
    %p77 = por %p75, %p76
    %p78 = scmp.ne.s32.totalorder %s66, %s67
    %p79 = scmp.eq.s32.totalorder %s15, 1
    %p80 = por %p78, %p79
    %p82 = scmp.ne.s32.totalorder %s67, %s81
    %p83 = scmp.eq.s32.totalorder %s15, 0
    %p84 = por %p82, %p83
    %s85 = ssub.s32 %s9, %s16
    %p86 = scmp.eq.s32.totalorder %s85, 0
    %s88 = sadd.s32 %s87, 1
    %s89 = scalar_select %p86, %s87, %s88
    %p92 = pneg %p86
    %p93 = scmp.eq.s32.totalorder %s9, 1
    %p94 = por %p92, %p93
    %p95 = scmp.ne.s32.totalorder %s87, %s90
    %p96 = scmp.eq.s32.totalorder %s9, 0
    %p97 = por %p95, %p96
    %p98 = scmp.ne.s32.totalorder %s87, %s90
    %p99 = scmp.eq.s32.totalorder %s14, 1
    %p100 = por %p98, %p99
    %p101 = scmp.ne.s32.totalorder %s90, %s91
    %p102 = scmp.eq.s32.totalorder %s14, 0
    %p103 = por %p101, %p102
    %p104 = scmp.ne.s32.totalorder %s90, %s91
    %p105 = scmp.eq.s32.totalorder %s15, 1
    %p106 = por %p104, %p105
    %p108 = scmp.ne.s32.totalorder %s91, %s107
    %p109 = scmp.eq.s32.totalorder %s15, 0
    %p110 = por %p108, %p109
    %p111 = scmp.le.s32.totalorder 1, %s9
    %p112 = scmp.lt.s32.totalorder %s9, 3
    %p113 = pnand %p111, %p112
    %p114 = pneg %p113
    // Predicated region
    $region9: #{tpu_custom_call.1} parent=5 // pred_check
      _
    $region10: #{tpu_custom_call.1} parent=5 // pred_check_branch
      %116 = sbr.rel (%p113) target = $region12
    $region11: #{tpu_custom_call.1} parent=5 // pred_region
      %s117 = ssub.s32 %s9, 1
      // Predicated region
      $region13: #{tpu_custom_call.1} parent=11 // pred_check
        %p118 = pneg %p56
      $region14: #{tpu_custom_call.1} parent=11 // pred_check_branch
        %120 = sbr.rel (%p118) target = $region16
      $region15: #{tpu_custom_call.1} parent=11 // pred_region
        _
      $region16: #{tpu_custom_call.1} parent=11 // pred_fallthru
        _
      // Predicated region
      $region17: #{tpu_custom_call.1} parent=11 // pred_check
        %p121 = pneg %p77
      $region18: #{tpu_custom_call.1} parent=11 // pred_check_branch
        %123 = sbr.rel (%p121) target = $region20
      $region19: #{tpu_custom_call.1} parent=11 // pred_region
        _
      $region20: #{tpu_custom_call.1} parent=11 // pred_fallthru
        _
    $region12: #{tpu_custom_call.1} parent=5 // pred_fallthru
      _
    %p124 = scmp.lt.s32.totalorder %s9, 2
    // Predicated region
    $region21: #{tpu_custom_call.1} parent=5 // pred_check
      %p125 = pneg %p124
    $region22: #{tpu_custom_call.1} parent=5 // pred_check_branch
      %127 = sbr.rel (%p125) target = $region24
    $region23: #{tpu_custom_call.1} parent=5 // pred_region
      // Predicated region
      $region25: #{tpu_custom_call.1} parent=23 // pred_check
        %p128 = pneg %p29
      $region26: #{tpu_custom_call.1} parent=23 // pred_check_branch
        %130 = sbr.rel (%p128) target = $region28
      $region27: #{tpu_custom_call.1} parent=23 // pred_region
        %s131 = smul.u32 32, %s9
        %p132 = scmp.lt.s32.totalorder %s131, 63
        %s133 = scalar_select %p132, %s131, 63
        %s134 = smul.addr %s133, 8
        %s135 = scalar_lea.vmem %s0, %s134
        %s136 = smul.u32 32, %s9
      $region28: #{tpu_custom_call.1} parent=23 // pred_fallthru
        _
    $region24: #{tpu_custom_call.1} parent=5 // pred_fallthru
      _
    %p137 = scmp.le.s32.totalorder 1, %s9
    %p138 = scmp.lt.s32.totalorder %s9, 3
    %p139 = pnand %p137, %p138
    %p140 = pneg %p139
    // Predicated region
    $region29: #{tpu_custom_call.1} parent=5 // pred_check
      _
    $region30: #{tpu_custom_call.1} parent=5 // pred_check_branch
      %142 = sbr.rel (%p139) target = $region32
    $region31: #{tpu_custom_call.1} parent=5 // pred_region
      %s143 = ssub.s32 %s9, 1
      %s144 = smul.u32 32, %s14
      %p145 = scmp.lt.s32.totalorder %s144, 63
      %s146 = scalar_select %p145, %s144, 63
      %s147 = smul.addr %s146, 8
      %s148 = scalar_lea.vmem %s0, %s147
      %p149 = pneg %p35
      %p150 = pneg %p32
      %p151 = pneg %p56
      %p152 = pneg %p53
      %p153 = pneg %p77
      %p154 = pneg %p74
      %p155 = pneg %p103
      %p156 = pneg %p100
      %s157 = smul.u32 32, %s14
      %p158 = scmp.lt.s32.totalorder %s157, 63
      %s159 = scalar_select %p158, %s157, 63
      %s160 = smul.addr %s159, 8
      %s161 = scalar_lea.vmem %s3, %s160
      %s162 = smul.u32 32, %s14
      %p163 = scmp.lt.s32.totalorder %s162, 63
      %s164 = scalar_select %p163, %s162, 63
      %s165 = smul.addr %s164, 8
      %s166 = scalar_lea.vmem %s0, %s165
      %s167 = smul.u32 32, %s14
      %s168 = smul.u32 32, %s14
      %p169 = scmp.lt.s32.totalorder %s168, 63
      %s170 = scalar_select %p169, %s168, 63
      %s171 = smul.addr %s170, 8
      %s172 = scalar_lea.vmem %s3, %s171
      %s173 = smul.u32 32, %s14
      %v174 = vld [vmem:[%s166] sm:$0xff]
      %v175 = vld [vmem:[%s166 + $0x8] sm:$0xff]
      %v176 = vld [vmem:[%s166 + $0x10] sm:$0xff]
      %v177 = vld [vmem:[%s166 + $0x18] sm:$0xff]
      %v178 = vld [vmem:[%s166 + $0x20] sm:$0xff]
      %v179 = vld [vmem:[%s166 + $0x28] sm:$0xff]
      %v180 = vld [vmem:[%s166 + $0x30] sm:$0xff]
      %v181 = vld [vmem:[%s166 + $0x38] sm:$0xff]
      %v182 = vld [vmem:[%s166 + $0x40] sm:$0xff]
      %v183 = vld [vmem:[%s166 + $0x48] sm:$0xff]
      %v184 = vld [vmem:[%s166 + $0x50] sm:$0xff]
      %v185 = vld [vmem:[%s166 + $0x58] sm:$0xff]
      %v186 = vld [vmem:[%s166 + $0x60] sm:$0xff]
      %v187 = vld [vmem:[%s166 + $0x68] sm:$0xff]
      %v188 = vld [vmem:[%s166 + $0x70] sm:$0xff]
      %v189 = vld [vmem:[%s166 + $0x78] sm:$0xff]
      %v190 = vld [vmem:[%s166 + $0x80] sm:$0xff]
      %v191 = vld [vmem:[%s166 + $0x88] sm:$0xff]
      %v192 = vld [vmem:[%s166 + $0x90] sm:$0xff]
      %v193 = vld [vmem:[%s166 + $0x98] sm:$0xff]
      %v194 = vld [vmem:[%s166 + $0xa0] sm:$0xff]
      %v195 = vld [vmem:[%s166 + $0xa8] sm:$0xff]
      %v196 = vld [vmem:[%s166 + $0xb0] sm:$0xff]
      %v197 = vld [vmem:[%s166 + $0xb8] sm:$0xff]
      %v198 = vld [vmem:[%s166 + $0xc0] sm:$0xff]
      %v199 = vld [vmem:[%s166 + $0xc8] sm:$0xff]
      %v200 = vld [vmem:[%s166 + $0xd0] sm:$0xff]
      %v201 = vld [vmem:[%s166 + $0xd8] sm:$0xff]
      %v202 = vld [vmem:[%s166 + $0xe0] sm:$0xff]
      %v203 = vld [vmem:[%s166 + $0xe8] sm:$0xff]
      %v204 = vld [vmem:[%s166 + $0xf0] sm:$0xff]
      %v205 = vld [vmem:[%s166 + $0xf8] sm:$0xff]
      %v206 = vld [vmem:[%s1] sm:$0xff]
      %v207 = vld [vmem:[%s1 + $0x8] sm:$0xff]
      %v208 = vld [vmem:[%s2] sm:$0x1]
      %v210 = vlaneseq
      %v211 = vshrl.u32 %v210, 7
      %v212 = vsub.s32 0, %v211
      %v213 = vrot.slane %v208, %v212
      %vm215 = vcmask 130048
      %v217 = vsel %vm215, %v174, 0
      %v220 = vsel %vm215, %v175, 0
      %v223 = vsel %vm215, %v176, 0
      %v226 = vsel %vm215, %v177, 0
      %v229 = vsel %vm215, %v178, 0
      %v232 = vsel %vm215, %v179, 0
      %v235 = vsel %vm215, %v180, 0
      %v238 = vsel %vm215, %v181, 0
      %v241 = vsel %vm215, %v182, 0
      %v244 = vsel %vm215, %v183, 0
      %v247 = vsel %vm215, %v184, 0
      %v250 = vsel %vm215, %v185, 0
      %v253 = vsel %vm215, %v186, 0
      %v256 = vsel %vm215, %v187, 0
      %v259 = vsel %vm215, %v188, 0
      %v262 = vsel %vm215, %v189, 0
      %v265 = vsel %vm215, %v190, 0
      %v268 = vsel %vm215, %v191, 0
      %v271 = vsel %vm215, %v192, 0
      %v274 = vsel %vm215, %v193, 0
      %v277 = vsel %vm215, %v194, 0
      %v280 = vsel %vm215, %v195, 0
      %v283 = vsel %vm215, %v196, 0
      %v286 = vsel %vm215, %v197, 0
      %v289 = vsel %vm215, %v198, 0
      %v292 = vsel %vm215, %v199, 0
      %v295 = vsel %vm215, %v200, 0
      %v298 = vsel %vm215, %v201, 0
      %v301 = vsel %vm215, %v202, 0
      %v304 = vsel %vm215, %v203, 0
      %v307 = vsel %vm215, %v204, 0
      %v310 = vsel %vm215, %v205, 0
      %312 = vmatprep.subr.mxu0 0.0
      %313 = vmatpush1.msra.mxu0 %v206
      %314 = vmatprep.subr.mxu0 0.0
      %315 = vmatpush1.msra.mxu0 %v207
      %316 = vmatprep.subr.mxu0 0.0
      %317 = vmatpush1.msra.mxu0 0.0
      %318 = vmatprep.subr.mxu0 0.0
      %319 = vmatpush1.msra.mxu0 0.0
      %320 = vmatprep.subr.mxu0 0.0
      %321 = vmatpush1.msra.mxu0 0.0
      %322 = vmatprep.subr.mxu0 0.0
      %323 = vmatpush1.msra.mxu0 0.0
      %324 = vmatprep.subr.mxu0 0.0
      %325 = vmatpush1.msra.mxu0 0.0
      %326 = vmatprep.subr.mxu0 0.0
      %327 = vmatpush1.msra.mxu0 0.0
      %328 = vmatprep.subr.mxu0 0.0
      %329 = vmatpush1.msra.mxu0 0.0
      %330 = vmatprep.subr.mxu0 0.0
      %331 = vmatpush1.msra.mxu0 0.0
      %332 = vmatprep.subr.mxu0 0.0
      %333 = vmatpush1.msra.mxu0 0.0
      %334 = vmatprep.subr.mxu0 0.0
      %335 = vmatpush1.msra.mxu0 0.0
      %336 = vmatprep.subr.mxu0 0.0
      %337 = vmatpush1.msra.mxu0 0.0
      %338 = vmatprep.subr.mxu0 0.0
      %339 = vmatpush1.msra.mxu0 0.0
      %340 = vmatprep.subr.mxu0 0.0
      %341 = vmatpush1.msra.mxu0 0.0
      %342 = vmatprep.subr.mxu0 0.0
      %343 = vmatpush1.msra.mxu0 0.0
      %344 = vmatprep.subr.mxu0 0.0
      %345 = vmatpush1.msra.mxu0 0.0
      %346 = vmatprep.subr.mxu0 0.0
      %347 = vmatpush1.msra.mxu0 0.0
      %348 = vmatprep.subr.mxu0 0.0
      %349 = vmatpush1.msra.mxu0 0.0
      %350 = vmatprep.subr.mxu0 0.0
      %351 = vmatpush1.msra.mxu0 0.0
      %352 = vmatprep.subr.mxu0 0.0
      %353 = vmatpush1.msra.mxu0 0.0
      %354 = vmatprep.subr.mxu0 0.0
      %355 = vmatpush1.msra.mxu0 0.0
      %356 = vmatprep.subr.mxu0 0.0
      %357 = vmatpush1.msra.mxu0 0.0
      %358 = vmatprep.subr.mxu0 0.0
      %359 = vmatpush1.msra.mxu0 0.0
      %360 = vmatprep.subr.mxu0 0.0
      %361 = vmatpush1.msra.mxu0 0.0
      %362 = vmatprep.subr.mxu0 0.0
      %363 = vmatpush1.msra.mxu0 0.0
      %364 = vmatprep.subr.mxu0 0.0
      %365 = vmatpush1.msra.mxu0 0.0
      %366 = vmatprep.subr.mxu0 0.0
      %367 = vmatpush1.msra.mxu0 0.0
      %368 = vmatprep.subr.mxu0 0.0
      %369 = vmatpush1.msra.mxu0 0.0
      %370 = vmatprep.subr.mxu0 0.0
      %371 = vmatpush1.msra.mxu0 0.0
      %372 = vmatprep.subr.mxu0 0.0
      %373 = vmatpush1.msra.mxu0 0.0
      %374 = vmatprep.subr.mxu0 0.0
      %375 = vmatpush1.msra.mxu0 0.0
      %376 = vmatprep.mubr.f32.mxu0 0.0
      %377 = vmatmul.mubr.f32.gmra.mrb[0].mxu0 %v217
      %v378 = vpop.f32.mrb[0].mxu0
      %v379 = vadd.f32 %v213, %v378
      %v380 = vpop.f32.mrb[0].mxu0
      %381 = vmatprep.mubr.f32.mxu0 0.0
      %382 = vmatmul.mubr.f32.gmra.mrb[0].mxu0 %v220
      %v383 = vpop.f32.mrb[0].mxu0
      %v384 = vadd.f32 %v213, %v383
      %v385 = vpop.f32.mrb[0].mxu0
      %386 = vmatprep.mubr.f32.mxu0 0.0
      %387 = vmatmul.mubr.f32.gmra.mrb[0].mxu0 %v223
      %v388 = vpop.f32.mrb[0].mxu0
      %v389 = vadd.f32 %v213, %v388
      %v390 = vpop.f32.mrb[0].mxu0
      %391 = vmatprep.mubr.f32.mxu0 0.0
      %392 = vmatmul.mubr.f32.gmra.mrb[0].mxu0 %v226
      %v393 = vpop.f32.mrb[0].mxu0
      %v394 = vadd.f32 %v213, %v393
      %v395 = vpop.f32.mrb[0].mxu0
      %396 = vmatprep.mubr.f32.mxu0 0.0
      %397 = vmatmul.mubr.f32.gmra.mrb[0].mxu0 %v229
      %v398 = vpop.f32.mrb[0].mxu0
      %v399 = vadd.f32 %v213, %v398
      %v400 = vpop.f32.mrb[0].mxu0
      %401 = vmatprep.mubr.f32.mxu0 0.0
      %402 = vmatmul.mubr.f32.gmra.mrb[0].mxu0 %v232
      %v403 = vpop.f32.mrb[0].mxu0
      %v404 = vadd.f32 %v213, %v403
      %v405 = vpop.f32.mrb[0].mxu0
      %406 = vmatprep.mubr.f32.mxu0 0.0
      %407 = vmatmul.mubr.f32.gmra.mrb[0].mxu0 %v235
      %v408 = vpop.f32.mrb[0].mxu0
      %v409 = vadd.f32 %v213, %v408
      %v410 = vpop.f32.mrb[0].mxu0
      %411 = vmatprep.mubr.f32.mxu0 0.0
      %412 = vmatmul.mubr.f32.gmra.mrb[0].mxu0 %v238
      %v413 = vpop.f32.mrb[0].mxu0
      %v414 = vadd.f32 %v213, %v413
      %v415 = vpop.f32.mrb[0].mxu0
      %416 = vmatprep.mubr.f32.mxu0 0.0
      %417 = vmatmul.mubr.f32.gmra.mrb[0].mxu0 %v241
      %v418 = vpop.f32.mrb[0].mxu0
      %v419 = vadd.f32 %v213, %v418
      %v420 = vpop.f32.mrb[0].mxu0
      %421 = vmatprep.mubr.f32.mxu0 0.0
      %422 = vmatmul.mubr.f32.gmra.mrb[0].mxu0 %v244
      %v423 = vpop.f32.mrb[0].mxu0
      %v424 = vadd.f32 %v213, %v423
      %v425 = vpop.f32.mrb[0].mxu0
      %426 = vmatprep.mubr.f32.mxu0 0.0
      %427 = vmatmul.mubr.f32.gmra.mrb[0].mxu0 %v247
      %v428 = vpop.f32.mrb[0].mxu0
      %v429 = vadd.f32 %v213, %v428
      %v430 = vpop.f32.mrb[0].mxu0
      %431 = vmatprep.mubr.f32.mxu0 0.0
      %432 = vmatmul.mubr.f32.gmra.mrb[0].mxu0 %v250
      %v433 = vpop.f32.mrb[0].mxu0
      %v434 = vadd.f32 %v213, %v433
      %v435 = vpop.f32.mrb[0].mxu0
      %436 = vmatprep.mubr.f32.mxu0 0.0
      %437 = vmatmul.mubr.f32.gmra.mrb[0].mxu0 %v253
      %v438 = vpop.f32.mrb[0].mxu0
      %v439 = vadd.f32 %v213, %v438
      %v440 = vpop.f32.mrb[0].mxu0
      %441 = vmatprep.mubr.f32.mxu0 0.0
      %442 = vmatmul.mubr.f32.gmra.mrb[0].mxu0 %v256
      %v443 = vpop.f32.mrb[0].mxu0
      %v444 = vadd.f32 %v213, %v443
      %v445 = vpop.f32.mrb[0].mxu0
      %446 = vmatprep.mubr.f32.mxu0 0.0
      %447 = vmatmul.mubr.f32.gmra.mrb[0].mxu0 %v259
      %v448 = vpop.f32.mrb[0].mxu0
      %v449 = vadd.f32 %v213, %v448
      %v450 = vpop.f32.mrb[0].mxu0
      %451 = vmatprep.mubr.f32.mxu0 0.0
      %452 = vmatmul.mubr.f32.gmra.mrb[0].mxu0 %v262
      %v453 = vpop.f32.mrb[0].mxu0
      %v454 = vadd.f32 %v213, %v453
      %v455 = vpop.f32.mrb[0].mxu0
      %456 = vmatprep.mubr.f32.mxu0 0.0
      %457 = vmatmul.mubr.f32.gmra.mrb[0].mxu0 %v265
      %v458 = vpop.f32.mrb[0].mxu0
      %v459 = vadd.f32 %v213, %v458
      %v460 = vpop.f32.mrb[0].mxu0
      %461 = vmatprep.mubr.f32.mxu0 0.0
      %462 = vmatmul.mubr.f32.gmra.mrb[0].mxu0 %v268
      %v463 = vpop.f32.mrb[0].mxu0
      %v464 = vadd.f32 %v213, %v463
      %v465 = vpop.f32.mrb[0].mxu0
      %466 = vmatprep.mubr.f32.mxu0 0.0
      %467 = vmatmul.mubr.f32.gmra.mrb[0].mxu0 %v271
      %v468 = vpop.f32.mrb[0].mxu0
      %v469 = vadd.f32 %v213, %v468
      %v470 = vpop.f32.mrb[0].mxu0
      %471 = vmatprep.mubr.f32.mxu0 0.0
      %472 = vmatmul.mubr.f32.gmra.mrb[0].mxu0 %v274
      %v473 = vpop.f32.mrb[0].mxu0
      %v474 = vadd.f32 %v213, %v473
      %v475 = vpop.f32.mrb[0].mxu0
      %476 = vmatprep.mubr.f32.mxu0 0.0
      %477 = vmatmul.mubr.f32.gmra.mrb[0].mxu0 %v277
      %v478 = vpop.f32.mrb[0].mxu0
      %v479 = vadd.f32 %v213, %v478
      %v480 = vpop.f32.mrb[0].mxu0
      %481 = vmatprep.mubr.f32.mxu0 0.0
      %482 = vmatmul.mubr.f32.gmra.mrb[0].mxu0 %v280
      %v483 = vpop.f32.mrb[0].mxu0
      %v484 = vadd.f32 %v213, %v483
      %v485 = vpop.f32.mrb[0].mxu0
      %486 = vmatprep.mubr.f32.mxu0 0.0
      %487 = vmatmul.mubr.f32.gmra.mrb[0].mxu0 %v283
      %v488 = vpop.f32.mrb[0].mxu0
      %v489 = vadd.f32 %v213, %v488
      %v490 = vpop.f32.mrb[0].mxu0
      %491 = vmatprep.mubr.f32.mxu0 0.0
      %492 = vmatmul.mubr.f32.gmra.mrb[0].mxu0 %v286
      %v493 = vpop.f32.mrb[0].mxu0
      %v494 = vadd.f32 %v213, %v493
      %v495 = vpop.f32.mrb[0].mxu0
      %496 = vmatprep.mubr.f32.mxu0 0.0
      %497 = vmatmul.mubr.f32.gmra.mrb[0].mxu0 %v289
      %v498 = vpop.f32.mrb[0].mxu0
      %v499 = vadd.f32 %v213, %v498
      %v500 = vpop.f32.mrb[0].mxu0
      %501 = vmatprep.mubr.f32.mxu0 0.0
      %502 = vmatmul.mubr.f32.gmra.mrb[0].mxu0 %v292
      %v503 = vpop.f32.mrb[0].mxu0
      %v504 = vadd.f32 %v213, %v503
      %v505 = vpop.f32.mrb[0].mxu0
      %506 = vmatprep.mubr.f32.mxu0 0.0
      %507 = vmatmul.mubr.f32.gmra.mrb[0].mxu0 %v295
      %v508 = vpop.f32.mrb[0].mxu0
      %v509 = vadd.f32 %v213, %v508
      %v510 = vpop.f32.mrb[0].mxu0
      %511 = vmatprep.mubr.f32.mxu0 0.0
      %512 = vmatmul.mubr.f32.gmra.mrb[0].mxu0 %v298
      %v513 = vpop.f32.mrb[0].mxu0
      %v514 = vadd.f32 %v213, %v513
      %v515 = vpop.f32.mrb[0].mxu0
      %516 = vmatprep.mubr.f32.mxu0 0.0
      %517 = vmatmul.mubr.f32.gmra.mrb[0].mxu0 %v301
      %v518 = vpop.f32.mrb[0].mxu0
      %v519 = vadd.f32 %v213, %v518
      %v520 = vpop.f32.mrb[0].mxu0
      %521 = vmatprep.mubr.f32.mxu0 0.0
      %522 = vmatmul.mubr.f32.gmra.mrb[0].mxu0 %v304
      %v523 = vpop.f32.mrb[0].mxu0
      %v524 = vadd.f32 %v213, %v523
      %v525 = vpop.f32.mrb[0].mxu0
      %526 = vmatprep.mubr.f32.mxu0 0.0
      %527 = vmatmul.mubr.f32.gmra.mrb[0].mxu0 %v307
      %v528 = vpop.f32.mrb[0].mxu0
      %v529 = vadd.f32 %v213, %v528
      %v530 = vpop.f32.mrb[0].mxu0
      %531 = vmatprep.mubr.f32.mxu0 0.0
      %532 = vmatmul.mubr.f32.gmra.mrb[0].mxu0 %v310
      %v533 = vpop.f32.mrb[0].mxu0
      %v534 = vadd.f32 %v213, %v533
      %v535 = vpop.f32.mrb[0].mxu0
      %536 = vdwg.mxu0
      %vm537 = vcmask 31744
      %538 = vst.msk [vmem:[%s172] sm:$0xff] %vm537, %v379
      %539 = vst.msk [vmem:[%s172 + $0x8] sm:$0xff] %vm537, %v384
      %540 = vst.msk [vmem:[%s172 + $0x10] sm:$0xff] %vm537, %v389
      %541 = vst.msk [vmem:[%s172 + $0x18] sm:$0xff] %vm537, %v394
      %542 = vst.msk [vmem:[%s172 + $0x20] sm:$0xff] %vm537, %v399
      %543 = vst.msk [vmem:[%s172 + $0x28] sm:$0xff] %vm537, %v404
      %544 = vst.msk [vmem:[%s172 + $0x30] sm:$0xff] %vm537, %v409
      %545 = vst.msk [vmem:[%s172 + $0x38] sm:$0xff] %vm537, %v414
      %546 = vst.msk [vmem:[%s172 + $0x40] sm:$0xff] %vm537, %v419
      %547 = vst.msk [vmem:[%s172 + $0x48] sm:$0xff] %vm537, %v424
      %548 = vst.msk [vmem:[%s172 + $0x50] sm:$0xff] %vm537, %v429
      %549 = vst.msk [vmem:[%s172 + $0x58] sm:$0xff] %vm537, %v434
      %550 = vst.msk [vmem:[%s172 + $0x60] sm:$0xff] %vm537, %v439
      %551 = vst.msk [vmem:[%s172 + $0x68] sm:$0xff] %vm537, %v444
      %552 = vst.msk [vmem:[%s172 + $0x70] sm:$0xff] %vm537, %v449
      %553 = vst.msk [vmem:[%s172 + $0x78] sm:$0xff] %vm537, %v454
      %554 = vst.msk [vmem:[%s172 + $0x80] sm:$0xff] %vm537, %v459
      %555 = vst.msk [vmem:[%s172 + $0x88] sm:$0xff] %vm537, %v464
      %556 = vst.msk [vmem:[%s172 + $0x90] sm:$0xff] %vm537, %v469
      %557 = vst.msk [vmem:[%s172 + $0x98] sm:$0xff] %vm537, %v474
      %558 = vst.msk [vmem:[%s172 + $0xa0] sm:$0xff] %vm537, %v479
      %559 = vst.msk [vmem:[%s172 + $0xa8] sm:$0xff] %vm537, %v484
      %560 = vst.msk [vmem:[%s172 + $0xb0] sm:$0xff] %vm537, %v489
      %561 = vst.msk [vmem:[%s172 + $0xb8] sm:$0xff] %vm537, %v494
      %562 = vst.msk [vmem:[%s172 + $0xc0] sm:$0xff] %vm537, %v499
      %563 = vst.msk [vmem:[%s172 + $0xc8] sm:$0xff] %vm537, %v504
      %564 = vst.msk [vmem:[%s172 + $0xd0] sm:$0xff] %vm537, %v509
      %565 = vst.msk [vmem:[%s172 + $0xd8] sm:$0xff] %vm537, %v514
      %566 = vst.msk [vmem:[%s172 + $0xe0] sm:$0xff] %vm537, %v519
      %567 = vst.msk [vmem:[%s172 + $0xe8] sm:$0xff] %vm537, %v524
      %568 = vst.msk [vmem:[%s172 + $0xf0] sm:$0xff] %vm537, %v529
      %569 = vst.msk [vmem:[%s172 + $0xf8] sm:$0xff] %vm537, %v534
      %s570 = smul.u32 32, %s14
      %p571 = scmp.lt.s32.totalorder %s570, 63
      %s572 = scalar_select %p571, %s570, 63
      %s573 = smul.addr %s572, 8
      %s574 = scalar_lea.vmem %s3, %s573
      // Predicated region
      $region33: #{tpu_custom_call.1} parent=31 // pred_check
        %p575 = pneg %p100
      $region34: #{tpu_custom_call.1} parent=31 // pred_check_branch
        %577 = sbr.rel (%p575) target = $region36
      $region35: #{tpu_custom_call.1} parent=31 // pred_region
        %s578 = smul.u32 32, %s14
      $region36: #{tpu_custom_call.1} parent=31 // pred_fallthru
        _
    $region32: #{tpu_custom_call.1} parent=5 // pred_fallthru
      _
    %p579 = scmp.le.s32.totalorder 2, %s9
    // Predicated region
    $region37: #{tpu_custom_call.1} parent=5 // pred_check
      %p580 = pneg %p579
    $region38: #{tpu_custom_call.1} parent=5 // pred_check_branch
      %582 = sbr.rel (%p580) target = $region40
    $region39: #{tpu_custom_call.1} parent=5 // pred_region
      %s583 = ssub.s32 %s9, 2
      // Predicated region
      $region41: #{tpu_custom_call.1} parent=39 // pred_check
        %p584 = pneg %p106
      $region42: #{tpu_custom_call.1} parent=39 // pred_check_branch
        %586 = sbr.rel (%p584) target = $region44
      $region43: #{tpu_custom_call.1} parent=39 // pred_region
        %s587 = smul.u32 32, %s15
        %p588 = scmp.lt.s32.totalorder %s587, 63
        %s589 = scalar_select %p588, %s587, 63
        %s590 = smul.addr %s589, 8
        %s591 = scalar_lea.vmem %s3, %s590
      $region44: #{tpu_custom_call.1} parent=39 // pred_fallthru
        _
    $region40: #{tpu_custom_call.1} parent=5 // pred_fallthru
      _
  $region6: #{tpu_custom_call.1} parent=0 // loop_footer
    %s13 = sadd.s32 1, %s9
  $region7: #{tpu_custom_call.1} parent=0 // loop_footer_branch
    %8 = sbr.rel target = $region3
  $region8: #{tpu_custom_call.1} parent=0 // loop_exit
    _

</llo_original>
